<compile_context>
chip_gen: v7x
topology: tpu7x:2x2x1
jax: 0.10.0
libtpu: 0.0.40
codegen_flags: <defaults>
</compile_context>

<pallas_src>
import jax
import jax.numpy as jnp
from jax.experimental import pallas as pl
from jax.experimental.pallas import tpu as pltpu

_LANE = 128
_SUBLANE = 8


def _drop_path_kernel(scale_ref, x_ref, o_ref):
    # scale_ref: (TB, 1) per-sample scale (0 or 1/keep_prob); x_ref: (TB, TN).
    o_ref[...] = x_ref[...] * scale_ref[...]


def _drop_path_add_kernel(scale_ref, x_ref, r_ref, o_ref):
    # Fused residual add: o = residual + scale * x (one HBM pass instead of two).
    o_ref[...] = r_ref[...] + x_ref[...] * scale_ref[...]


def _vmem_capacity_bytes():
    try:
        cap = getattr(pltpu.get_tpu_info(), "vmem_capacity_bytes", None)
        if cap:
            return int(cap)
    except Exception:
        pass
    return 64 * 1024 * 1024  # conservative default (v7x per-TC VMEM)


def _tile_params(B, N, dtype):
    dtype_bytes = jnp.dtype(dtype).itemsize
    # Sublane tile matched to dtype packing: f32 -> 8, bf16/f16 -> 16, i8 -> 32.
    tb_native = max(_SUBLANE, 32 // dtype_bytes)
    tb = B if B < tb_native else tb_native
    # Per-stream tile budget / scoped-VMEM limit by generation.
    vmem = _vmem_capacity_bytes()
    if vmem >= 100 * 1024 * 1024:      # v5e / v6e: 128 MiB physical VMEM
        tile_bytes, vmem_limit = 8 * 1024 * 1024, 64 * 1024 * 1024
    else:                              # v7x: 64 MiB physical VMEM
        tile_bytes, vmem_limit = 4 * 1024 * 1024, 32 * 1024 * 1024
    budget_elems = tile_bytes // dtype_bytes
    tn_budget = max(_LANE, (budget_elems // max(tb, 1)) // _LANE * _LANE)
    # Full-extent block when the whole row fits (always layout-legal); else a
    # multiple-of-128 lane tile -- Pallas masks the ragged edge block itself,
    # so N % 128 != 0 needs no pad / slice HBM passes.
    tn = N if N <= tn_budget else tn_budget
    return tb, tn, dtype_bytes, vmem_limit


def drop_path(x, *, drop_prob=0.0, training=True, scale_by_keep=True,
              key=None, seed=0, residual=None):
    if not 0.0 <= drop_prob <= 1.0:
        raise ValueError("Drop path prob should be between 0 and 1.")
    # Identity / inference path (matches PyTorch semantics).
    if drop_prob == 0.0 or not training:
        return x if residual is None else x + residual
    if x.size == 0:
        return x if residual is None else x + residual
    keep_prob = 1.0 - drop_prob

    # Per-sample keep decision + scale, computed once in plain JAX.
    # NOTE: pass a fresh `key` each training step; a fixed default seed
    # reproduces the identical drop mask on every call.
    if key is None:
        key = jax.random.PRNGKey(seed)

    B = x.shape[0]
    N = 1
    for d in x.shape[1:]:
        N *= d

    keep = jax.random.bernoulli(key, p=keep_prob, shape=(B,))
    scale_val = (1.0 / keep_prob) if (scale_by_keep and keep_prob > 0.0) else 1.0
    scale = jnp.where(keep, jnp.float32(scale_val), jnp.float32(0.0))
    scale = scale.astype(x.dtype).reshape(B, 1)

    x2 = x.reshape(B, N)
    tb, tn, dtype_bytes, vmem_limit = _tile_params(B, N, x.dtype)
    grid = (pl.cdiv(B, tb), pl.cdiv(N, tn))

    scale_spec = pl.BlockSpec((tb, 1), lambda bi, ni: (bi, 0))
    data_spec = pl.BlockSpec((tb, tn), lambda bi, ni: (bi, ni))
    compiler_params = pltpu.CompilerParams(
        dimension_semantics=("parallel", "parallel"),
        vmem_limit_bytes=vmem_limit,
    )

    # TODO(synk): for tiny tensors a plain-JAX `x * scale` would let XLA fuse
    # this with neighbouring elementwise ops; kept as a kernel here.
    if residual is None:
        cost = pl.CostEstimate(
            flops=B * N,
            transcendentals=0,
            bytes_accessed=2 * B * N * dtype_bytes + B * dtype_bytes,
        )
        out2 = pl.pallas_call(
            _drop_path_kernel,
            out_shape=jax.ShapeDtypeStruct((B, N), x.dtype),
            grid=grid,
            in_specs=[scale_spec, data_spec],
            out_specs=data_spec,
            compiler_params=compiler_params,
            cost_estimate=cost,
        )(scale, x2)
    else:
        if residual.shape != x.shape:
            raise ValueError("residual must match x's shape")
        r2 = residual.astype(x.dtype).reshape(B, N)
        cost = pl.CostEstimate(
            flops=2 * B * N,
            transcendentals=0,
            bytes_accessed=3 * B * N * dtype_bytes + B * dtype_bytes,
        )
        out2 = pl.pallas_call(
            _drop_path_add_kernel,
            out_shape=jax.ShapeDtypeStruct((B, N), x.dtype),
            grid=grid,
            in_specs=[scale_spec, data_spec, data_spec],
            out_specs=data_spec,
            compiler_params=compiler_params,
            cost_estimate=cost,
        )(scale, x2, r2)

    return out2.reshape(x.shape)


class DropPath:
    """Pallas-backed stochastic drop path per sample for residual blocks."""

    def __init__(self, drop_prob: float = 0.0, scale_by_keep: bool = True):
        if not 0.0 <= drop_prob <= 1.0:
            raise ValueError("Drop path prob should be between 0 and 1.")
        self.drop_prob = drop_prob
        self.scale_by_keep = scale_by_keep
        self.training = True  # mimics nn.Module training flag (no weights)

    def __call__(self, x, key=None, seed: int = 0, residual=None):
        return drop_path(
            x,
            drop_prob=self.drop_prob,
            training=self.training,
            scale_by_keep=self.scale_by_keep,
            key=key,
            seed=seed,
            residual=residual,
        )


if __name__ == "__main__":
    import numpy as np

    key = jax.random.PRNGKey(0)
    kx, kr, kd = jax.random.split(key, 3)
    x = jax.random.normal(kx, (2, 4, 16, 16), dtype=jnp.float32)  # NCHW
    residual = jax.random.normal(kr, (2, 4, 16, 16), dtype=jnp.float32)

    # Training path with non-zero drop probability -> kernel executes.
    mod = DropPath(drop_prob=0.5, scale_by_keep=True)
    y = jax.block_until_ready(mod(x, key=kd))

    # Each sample is either fully dropped (0) or scaled by 1/keep_prob.
    keep_prob = 1.0 - mod.drop_prob
    x_np = np.asarray(x)
    y_np = np.asarray(y)
    for b in range(x_np.shape[0]):
        dropped = np.allclose(y_np[b], 0.0, atol=1e-6)
        kept = np.allclose(y_np[b], x_np[b] / keep_prob, atol=1e-5)
        assert dropped or kept, f"sample {b}: not a valid drop-path output"

    # Fused residual-add path: residual + drop_path(x) in one HBM pass.
    y_fused = jax.block_until_ready(mod(x, key=kd, residual=residual))
    assert np.allclose(np.asarray(y_fused), np.asarray(residual) + y_np, atol=1e-5)

    # Eval / zero-prob path -> identity.
    mod_eval = DropPath(drop_prob=0.5)
    mod_eval.training = False
    y_eval = jax.block_until_ready(mod_eval(x))
    assert np.allclose(np.asarray(y_eval), x_np)

    print("KERNEL_OK")
</pallas_src>

<mosaic_0001>
module attributes {stable_mosaic.version = 11 : i64} {
  func.func @_drop_path_kernel(%arg0: i32, %arg1: i32, %arg2: memref<2x1xf32, #tpu.memory_space<vmem>>, %arg3: memref<2x1024xf32, #tpu.memory_space<vmem>>, %arg4: memref<2x1024xf32, #tpu.memory_space<vmem>>) attributes {dimension_semantics = [#tpu.dimension_semantics<parallel>, #tpu.dimension_semantics<parallel>], iteration_bounds = array<i64: 1, 1>, scalar_prefetch = 0 : i64, scratch_operands = 0 : i64, tpu.core_type = #tpu.core_type<tc>, window_params = [{transform_indices = @transform_0, window_bounds = array<i64: 2, 1>}, {transform_indices = @transform_1, window_bounds = array<i64: 2, 1024>}, {transform_indices = @transform_2, window_bounds = array<i64: 2, 1024>}]} {
    %c0 = arith.constant 0 : index
    %c0_0 = arith.constant 0 : index
    %0 = vector.load %arg3[%c0, %c0_0] : memref<2x1024xf32, #tpu.memory_space<vmem>>, vector<2x1024xf32>
    %c0_1 = arith.constant 0 : index
    %c0_2 = arith.constant 0 : index
    %1 = vector.load %arg2[%c0_1, %c0_2] : memref<2x1xf32, #tpu.memory_space<vmem>>, vector<2x1xf32>
    %2 = vector.broadcast %1 : vector<2x1xf32> to vector<2x1024xf32>
    %3 = arith.mulf %0, %2 : vector<2x1024xf32>
    %c0_3 = arith.constant 0 : index
    %c0_4 = arith.constant 0 : index
    %4 = vector.load %arg4[%c0_3, %c0_4] : memref<2x1024xf32, #tpu.memory_space<vmem>>, vector<2x1024xf32>
    tpu.vector_store %arg4[%c0_3, %c0_4], %3 {strides = array<i32>} : memref<2x1024xf32, #tpu.memory_space<vmem>>, vector<2x1024xf32>,
    return
  }
  func.func @transform_0(%arg0: i32, %arg1: i32) -> (i32, i32) {
    %c0_i32 = arith.constant 0 : i32
    %c0_i32_0 = arith.constant 0 : i32
    return %arg0, %c0_i32 : i32, i32
  }
  func.func @transform_1(%arg0: i32, %arg1: i32) -> (i32, i32) {
    %c0_i32 = arith.constant 0 : i32
    return %arg0, %arg1 : i32, i32
  }
  func.func @transform_2(%arg0: i32, %arg1: i32) -> (i32, i32) {
    %c0_i32 = arith.constant 0 : i32
    return %arg0, %arg1 : i32, i32
  }
}

</mosaic_0001>

<llo_original>
// kernel: tpu_custom_call.1
$region0: #{tpu_custom_call.1}
  #allocation0 [shape = 'u32[]', space=smem, size = 0x4, offset = 0x4, fixed_abs, tag = 'smem constant byte address 0x4 - core index']
  #allocation1 [shape = 'u32[144,128]{1,0:T(1,128)}', space=vmem, size = 0x12000, scoped, tag = 'internal scratch']
  %s0 = inlined_call_operand.vmem [shape: f32[2,1], index: 0, kind: input, shape index: {}]
  %s1 = inlined_call_operand.hbm [shape: f32[2,1024], index: 1, kind: input, shape index: {}]
  %s2 = inlined_call_operand.hbm [shape: f32[2,1024], index: 2, kind: output, shape index: {}]
  %s3 = sld [smem:[#allocation0]]
  $region22: #{tpu_custom_call.1} parent=0
    _
  %s5 = ssub.s32 1, %s3
  %s6 = scalar_select 0, %s5, %s3
  $region1: #{tpu_custom_call.1} parent=0
    #allocation2 [shape = 'u8[8192]{0}', space=vmem, size = 0x2000, scoped, tag = 'input window, operand 1, single buffered']
    #allocation3 [shape = 's32[1]{0}', space=sflag, size = 0x4, scoped, tag = 'scoped memory for tpu_custom_call.1']
    #allocation4 [shape = 's32[1]{0}', space=sflag, size = 0x4, scoped, tag = 'scoped memory for tpu_custom_call.1']
    #allocation5 [shape = 'u8[8192]{0}', space=vmem, size = 0x2000, scoped, tag = 'output window, operand 0, single buffered']
    %7 = vsyncpa [#allocation3], 0
    %8 = vsyncpa [#allocation4], 0
    // Predicated region
    $region2: #{tpu_custom_call.1} parent=1 // pred_check
      _
    $region3: #{tpu_custom_call.1} parent=1 // pred_check_branch
      %10 = sbr.rel (0) target = $region5
    $region4: #{tpu_custom_call.1} parent=1 // pred_region
      _
    $region5: #{tpu_custom_call.1} parent=1 // pred_fallthru
      _
    // Predicated region
    $region6: #{tpu_custom_call.1} parent=1 // pred_check
      _
    $region7: #{tpu_custom_call.1} parent=1 // pred_check_branch
      %12 = sbr.rel (0) target = $region9
    $region8: #{tpu_custom_call.1} parent=1 // pred_region
      %s14 = ssub.s32 256, 256
      %15 = vsyncadd [#allocation3], %s14
      %s17 = sshll.u32 [#allocation2], 4
      %s18 = int_to_ptr.vmem [resolvable:$true] %s17
      %20 = dma.hbm_to_vmem [thread:$0]  %s1, 256, %s18, [#allocation3]
    $region9: #{tpu_custom_call.1} parent=1 // pred_fallthru
      _
    // Predicated region
    $region10: #{tpu_custom_call.1} parent=1 // pred_check
      _
    $region11: #{tpu_custom_call.1} parent=1 // pred_check_branch
      %22 = sbr.rel (0) target = $region13
    $region12: #{tpu_custom_call.1} parent=1 // pred_region
      %23 = dma.done [#allocation3], 256
    $region13: #{tpu_custom_call.1} parent=1 // pred_fallthru
      _
    %v24 = vld [vmem:[#allocation2] sm:$0xff]
    %v25 = vld [vmem:[#allocation2 + $0x8] sm:$0xff]
    %v26 = vld [vmem:[%s0] sm:$0x3]
    %28 = vset.pattern.permute.xlu0 0
    %29 = vperm.xlu0 %28, %v26
    %v30 = vpop.permute.xlu0 %29
    %v32 = vunpack.c.l.s4 269488144
    %v33 = vunpack.c.0.s8 %v32
    %v34 = vlaneseq
    %v35 = vshrl.u32 %v34, 7
    %v36 = vsub.s32 %v33, %v35
    %v37 = vrot.slane %v30, %v36
    %v39 = vmul.f32 %v24, %v37
    %v40 = vmul.f32 %v25, %v37
    %41 = vst [vmem:[#allocation5] sm:$0xff] %v39
    %42 = vst [vmem:[#allocation5 + $0x8] sm:$0xff] %v40
    // Predicated region
    $region14: #{tpu_custom_call.1} parent=1 // pred_check
      _
    $region15: #{tpu_custom_call.1} parent=1 // pred_check_branch
      %44 = sbr.rel (0) target = $region17
    $region16: #{tpu_custom_call.1} parent=1 // pred_region
      %s46 = ssub.s32 256, 256
      %47 = vsyncadd [#allocation4], %s46
      %s49 = sshll.u32 [#allocation5], 4
      %s50 = int_to_ptr.vmem [resolvable:$true] %s49
      %52 = dma.vmem_to_hbm [thread:$0]  %s50, 256, %s2, [#allocation4]
    $region17: #{tpu_custom_call.1} parent=1 // pred_fallthru
      _
    // Predicated region
    $region18: #{tpu_custom_call.1} parent=1 // pred_check
      _
    $region19: #{tpu_custom_call.1} parent=1 // pred_check_branch
      %54 = sbr.rel (0) target = $region21
    $region20: #{tpu_custom_call.1} parent=1 // pred_region
      %55 = dma.done [#allocation4], 256
    $region21: #{tpu_custom_call.1} parent=1 // pred_fallthru
      _
    %56 = vsyncpa [#allocation3], 1
    %57 = vsyncpa [#allocation4], 1

</llo_original>
